<compile_context>
chip_gen: v6e
topology: v6e:2x2x1
jax: 0.10.0
libtpu: 0.0.40
codegen_flags: <defaults>
</compile_context>

<pallas_src>
import functools

import jax
import jax.numpy as jnp
from jax.experimental import pallas as pl
from jax.experimental.pallas import tpu as pltpu

_NUM_CORES = 2          # leading "parallel" grid axis: both TCs on v7x, harmless elsewhere
_LANE_EXPAND_OK = None  # tri-state cache: can Mosaic lower the in-kernel weight lane expansion?


def _wrmse_partial_kernel(yt_ref, yp_ref, w_ref, wsse_ref, wsum_ref, *, rep):
    """Accumulate per-lane weighted SSE and the raw weight sum for one core."""
    step = pl.program_id(1)

    @pl.when(step == 0)
    def _init():
        wsse_ref[...] = jnp.zeros_like(wsse_ref)
        wsum_ref[...] = jnp.zeros_like(wsum_ref)

    diff = yt_ref[...] - yp_ref[...]                     # (tile_rows, p)
    w_raw = w_ref[...]                                   # (tile_rows, p // rep)
    # Lane expansion: sample weight -> its `rep` output lanes.  Free filler
    # (VPU/XLU slack) when it lowers; otherwise the wrapper pre-expands (rep==1).
    w = jnp.repeat(w_raw, rep, axis=1) if rep > 1 else w_raw
    wsq = w * diff * diff                                # weighted squared error
    wsse_ref[...] += jnp.sum(wsq, axis=0, keepdims=True)                 # (1, p)
    wsum_ref[...] += jnp.sum(jnp.sum(w_raw, axis=1, keepdims=True),
                             axis=0, keepdims=True)                      # (1, 1)


def _partial_sums(yt_packed, yp_packed, w_arr, *, rep, tile_rows, steps_per_core, p):
    """Run the streaming reduction; returns per-core (wsse, wsum) partials."""
    rows_pad = yt_packed.shape[0]
    w_cols = w_arr.shape[1]
    data_spec = pl.BlockSpec((tile_rows, p), lambda c, i: (c * steps_per_core + i, 0))
    w_spec = pl.BlockSpec((tile_rows, w_cols), lambda c, i: (c * steps_per_core + i, 0))

    kernel = functools.partial(_wrmse_partial_kernel, rep=rep)
    wsse, wsum = pl.pallas_call(
        kernel,
        out_shape=(jax.ShapeDtypeStruct((_NUM_CORES, 1, p), jnp.float32),
                   jax.ShapeDtypeStruct((_NUM_CORES, 1, 1), jnp.float32)),
        grid_spec=pltpu.PrefetchScalarGridSpec(
            num_scalar_prefetch=0,
            grid=(_NUM_CORES, steps_per_core),
            in_specs=[data_spec, data_spec, w_spec],
            out_specs=[pl.BlockSpec((None, 1, p), lambda c, i: (c, 0, 0)),
                       pl.BlockSpec((None, 1, 1), lambda c, i: (c, 0, 0))],
        ),
        compiler_params=pltpu.CompilerParams(
            dimension_semantics=("parallel", "arbitrary"),
        ),
        cost_estimate=pl.CostEstimate(
            flops=int(5 * rows_pad * p),
            transcendentals=0,
            bytes_accessed=int(4 * rows_pad * (2 * p + w_cols)
                               + 4 * _NUM_CORES * (p + 1)),
        ),
    )(yt_packed, yp_packed, w_arr)
    return wsse, wsum


def mse_loss(y_true, y_pred, weights, *, max_tile_rows=4096):
    """Weighted RMSE matching sklearn.root_mean_squared_error(..., 'uniform_average')."""
    global _LANE_EXPAND_OK
    yt = jnp.asarray(y_true, jnp.float32)
    yp = jnp.asarray(y_pred, jnp.float32)
    w = jnp.asarray(weights, jnp.float32).reshape(-1)

    if yt.ndim == 1:
        yt = yt[:, None]
        yp = yp[:, None]
    n, d = yt.shape

    # Lane-dense packing: pad D up to the next divisor (or multiple) of 128 so
    # every packed row fills whole 128-lane vregs; `pack` samples share a row.
    if d <= 128:
        d_pad = 1
        while d_pad < d:
            d_pad *= 2                                   # divisors of 128 are powers of two
        pack = 128 // d_pad
    else:
        d_pad = -(-d // 128) * 128
        pack = 1
    p = pack * d_pad                                     # packed lane width (multiple of 128)

    rows = -(-n // pack)
    tile_rows = max(8, min((max_tile_rows // 8) * 8,
                           ((-(-rows // _NUM_CORES)) + 7) // 8 * 8))
    steps_per_core = -(-rows // (_NUM_CORES * tile_rows))
    rows_pad = _NUM_CORES * steps_per_core * tile_rows
    n_pad = rows_pad * pack

    # Zero padding keeps every partial sum exact: padded rows carry zero weight,
    # padded output columns carry zero diff.
    if n_pad != n or d_pad != d:
        yt = jnp.pad(yt, ((0, n_pad - n), (0, d_pad - d)))
        yp = jnp.pad(yp, ((0, n_pad - n), (0, d_pad - d)))
    if n_pad != n:
        w = jnp.pad(w, (0, n_pad - n))

    yt_packed = yt.reshape(rows_pad, p)                  # free, row-major reshape
    yp_packed = yp.reshape(rows_pad, p)
    w_rows = w.reshape(rows_pad, pack)                   # compact weight stream

    run = functools.partial(_partial_sums, yt_packed, yp_packed,
                            tile_rows=tile_rows, steps_per_core=steps_per_core, p=p)

    wsse = wsum = None
    w_dup = 1
    if d_pad == 1 or _LANE_EXPAND_OK is not False:
        try:
            wsse, wsum = run(w_rows, rep=d_pad)
            jax.block_until_ready((wsse, wsum))
            if d_pad > 1:
                _LANE_EXPAND_OK = True
        except Exception:
            if d_pad == 1:                               # nothing to expand -> real failure
                raise
            _LANE_EXPAND_OK = False
            wsse = None
    if wsse is None:
        # Fallback: Mosaic rejected the in-kernel lane expansion -> expand the
        # weights in the wrapper (extra HBM stream, always supported).
        w_full = jnp.repeat(w, d_pad).reshape(rows_pad, p)
        w_dup = d_pad
        wsse, wsum = run(w_full, rep=1)

    # Finalize on tiny arrays in plain JAX: fold cores and pack-groups, drop
    # padded output columns, normalize, sqrt, uniform average.
    wsse_lanes = jnp.sum(wsse.reshape(_NUM_CORES, p), axis=0)            # (p,)
    per_out = jnp.sum(wsse_lanes.reshape(pack, d_pad), axis=0)[:d]       # (d,)
    wsum_total = jnp.sum(wsum) / w_dup                                   # exact sum(w)
    return jnp.mean(jnp.sqrt(per_out / wsum_total))


def _reference(y_true, y_pred, weights):
    """Pure-JAX reference reproducing sklearn root_mean_squared_error semantics."""
    yt = jnp.asarray(y_true, jnp.float32)
    yp = jnp.asarray(y_pred, jnp.float32)
    w = jnp.asarray(weights, jnp.float32)
    if yt.ndim == 1:
        yt, yp = yt[:, None], yp[:, None]
    per_out = jnp.sum(w[:, None] * (yt - yp) ** 2, axis=0) / jnp.sum(w)
    return jnp.mean(jnp.sqrt(per_out))


if __name__ == "__main__":
    def _check(yt, yp, w, **kw):
        got = mse_loss(yt, yp, w, **kw)
        jax.block_until_ready(got)
        ref = _reference(yt, yp, w)
        assert jnp.allclose(got, ref, rtol=1e-5, atol=1e-6), (got, ref)

    # Case 1: small (N, D) batch, D divides 128 — one accumulation step per core.
    k1, k2, k3 = jax.random.split(jax.random.PRNGKey(0), 3)
    yt1 = jax.random.normal(k1, (64, 8), dtype=jnp.float32)
    yp1 = yt1 + 0.1 * jax.random.normal(k2, (64, 8), dtype=jnp.float32)
    w1 = jnp.abs(jax.random.normal(k3, (64,), dtype=jnp.float32)) + 0.1
    _check(yt1, yp1, w1)

    # Case 2: several grid steps per core + zero-weight row padding.
    k4, k5, k6 = jax.random.split(jax.random.PRNGKey(1), 3)
    yt2 = jax.random.normal(k4, (2000, 8), dtype=jnp.float32)
    yp2 = yt2 + 0.05 * jax.random.normal(k5, (2000, 8), dtype=jnp.float32)
    w2 = jnp.abs(jax.random.normal(k6, (2000,), dtype=jnp.float32)) + 0.1
    _check(yt2, yp2, w2, max_tile_rows=8)

    # Case 3: 1-D targets (flattened light curve), D == 1 path (weights already lane-dense).
    k7, k8, k9 = jax.random.split(jax.random.PRNGKey(2), 3)
    yt3 = jax.random.normal(k7, (300,), dtype=jnp.float32)
    yp3 = yt3 + 0.2 * jax.random.normal(k8, (300,), dtype=jnp.float32)
    w3 = jnp.abs(jax.random.normal(k9, (300,), dtype=jnp.float32)) + 0.1
    _check(yt3, yp3, w3)

    # Case 4: awkward D (does not divide 128) — exercises zero-column padding.
    k10, k11, k12 = jax.random.split(jax.random.PRNGKey(3), 3)
    yt4 = jax.random.normal(k10, (150, 5), dtype=jnp.float32)
    yp4 = yt4 + 0.3 * jax.random.normal(k11, (150, 5), dtype=jnp.float32)
    w4 = jnp.abs(jax.random.normal(k12, (150,), dtype=jnp.float32)) + 0.1
    _check(yt4, yp4, w4)

    print("KERNEL_OK")
</pallas_src>

<mosaic_0001>
module attributes {stable_mosaic.version = 11 : i64} {
  func.func @_wrmse_partial_kernel(%arg0: i32, %arg1: i32, %arg2: memref<8x128xf32, #tpu.memory_space<vmem>>, %arg3: memref<8x128xf32, #tpu.memory_space<vmem>>, %arg4: memref<8x16xf32, #tpu.memory_space<vmem>>, %arg5: memref<1x1x128xf32, #tpu.memory_space<vmem>>, %arg6: memref<1x1x1xf32, #tpu.memory_space<vmem>>) attributes {dimension_semantics = [#tpu.dimension_semantics<parallel>, #tpu.dimension_semantics<arbitrary>], iteration_bounds = array<i64: 2, 1>, scalar_prefetch = 0 : i64, scratch_operands = 0 : i64, tpu.core_type = #tpu.core_type<tc>, window_params = [{transform_indices = @transform_0, window_bounds = array<i64: 8, 128>}, {transform_indices = @transform_1, window_bounds = array<i64: 8, 128>}, {transform_indices = @transform_2, window_bounds = array<i64: 8, 16>}, {transform_indices = @transform_3, window_bounds = array<i64: 1, 1, 128>}, {transform_indices = @transform_4, window_bounds = array<i64: 1, 1, 1>}]} {
    %c0_i32 = arith.constant 0 : i32
    %0 = arith.cmpi eq, %arg1, %c0_i32 : i32
    %1 = arith.extui %0 : i1 to i32
    %c0_i32_0 = arith.constant 0 : i32
    %2 = arith.cmpi ne, %1, %c0_i32_0 : i32
    scf.if %2 {
      %cst_20 = arith.constant 0.000000e+00 : f32
      %30 = vector.broadcast %cst_20 : f32 to vector<1x128xf32>
      %c0_21 = arith.constant 0 : index
      %c0_22 = arith.constant 0 : index
      %c0_23 = arith.constant 0 : index
      %31 = vector.load %arg5[%c0_21, %c0_22, %c0_23] : memref<1x1x128xf32, #tpu.memory_space<vmem>>, vector<1x1x128xf32>
      %32 = vector.shape_cast %31 : vector<1x1x128xf32> to vector<1x128xf32>
      %33 = vector.shape_cast %30 : vector<1x128xf32> to vector<1x1x128xf32>
      tpu.vector_store %arg5[%c0_21, %c0_22, %c0_23], %33 {strides = array<i32>} : memref<1x1x128xf32, #tpu.memory_space<vmem>>, vector<1x1x128xf32>,
      %cst_24 = arith.constant 0.000000e+00 : f32
      %34 = vector.broadcast %cst_24 : f32 to vector<1x1xf32>
      %c0_25 = arith.constant 0 : index
      %c0_26 = arith.constant 0 : index
      %c0_27 = arith.constant 0 : index
      %35 = vector.load %arg6[%c0_25, %c0_26, %c0_27] : memref<1x1x1xf32, #tpu.memory_space<vmem>>, vector<1x1x1xf32>
      %36 = vector.shape_cast %35 : vector<1x1x1xf32> to vector<1x1xf32>
      %37 = vector.shape_cast %34 : vector<1x1xf32> to vector<1x1x1xf32>
      tpu.vector_store %arg6[%c0_25, %c0_26, %c0_27], %37 {strides = array<i32>} : memref<1x1x1xf32, #tpu.memory_space<vmem>>, vector<1x1x1xf32>,
    } else {
    }
    %c0 = arith.constant 0 : index
    %c0_1 = arith.constant 0 : index
    %3 = vector.load %arg2[%c0, %c0_1] : memref<8x128xf32, #tpu.memory_space<vmem>>, vector<8x128xf32>
    %c0_2 = arith.constant 0 : index
    %c0_3 = arith.constant 0 : index
    %4 = vector.load %arg3[%c0_2, %c0_3] : memref<8x128xf32, #tpu.memory_space<vmem>>, vector<8x128xf32>
    %5 = arith.subf %3, %4 : vector<8x128xf32>
    %c0_4 = arith.constant 0 : index
    %c0_5 = arith.constant 0 : index
    %6 = vector.load %arg4[%c0_4, %c0_5] : memref<8x16xf32, #tpu.memory_space<vmem>>, vector<8x16xf32>
    %7 = vector.shape_cast %6 : vector<8x16xf32> to vector<8x16x1xf32>
    %8 = vector.broadcast %7 : vector<8x16x1xf32> to vector<8x16x8xf32>
    %9 = vector.shape_cast %8 : vector<8x16x8xf32> to vector<8x128xf32>
    %10 = arith.mulf %9, %5 : vector<8x128xf32>
    %11 = arith.mulf %10, %5 : vector<8x128xf32>
    %c0_6 = arith.constant 0 : index
    %c0_7 = arith.constant 0 : index
    %c0_8 = arith.constant 0 : index
    %12 = vector.load %arg5[%c0_6, %c0_7, %c0_8] : memref<1x1x128xf32, #tpu.memory_space<vmem>>, vector<1x1x128xf32>
    %13 = vector.shape_cast %12 : vector<1x1x128xf32> to vector<1x128xf32>
    %cst = arith.constant dense<0.000000e+00> : vector<128xf32>
    %14 = vector.multi_reduction <add>, %11, %cst [0] : vector<8x128xf32> to vector<128xf32>
    %15 = vector.shape_cast %14 : vector<128xf32> to vector<1x128xf32>
    %16 = arith.addf %13, %15 : vector<1x128xf32>
    %c0_9 = arith.constant 0 : index
    %c0_10 = arith.constant 0 : index
    %c0_11 = arith.constant 0 : index
    %17 = vector.load %arg5[%c0_9, %c0_10, %c0_11] : memref<1x1x128xf32, #tpu.memory_space<vmem>>, vector<1x1x128xf32>
    %18 = vector.shape_cast %17 : vector<1x1x128xf32> to vector<1x128xf32>
    %19 = vector.shape_cast %16 : vector<1x128xf32> to vector<1x1x128xf32>
    tpu.vector_store %arg5[%c0_9, %c0_10, %c0_11], %19 {strides = array<i32>} : memref<1x1x128xf32, #tpu.memory_space<vmem>>, vector<1x1x128xf32>,
    %c0_12 = arith.constant 0 : index
    %c0_13 = arith.constant 0 : index
    %c0_14 = arith.constant 0 : index
    %20 = vector.load %arg6[%c0_12, %c0_13, %c0_14] : memref<1x1x1xf32, #tpu.memory_space<vmem>>, vector<1x1x1xf32>
    %21 = vector.shape_cast %20 : vector<1x1x1xf32> to vector<1x1xf32>
    %cst_15 = arith.constant dense<0.000000e+00> : vector<8xf32>
    %22 = vector.multi_reduction <add>, %6, %cst_15 [1] : vector<8x16xf32> to vector<8xf32>
    %23 = vector.shape_cast %22 : vector<8xf32> to vector<8x1xf32>
    %cst_16 = arith.constant dense<0.000000e+00> : vector<1xf32>
    %24 = vector.multi_reduction <add>, %23, %cst_16 [0] : vector<8x1xf32> to vector<1xf32>
    %25 = vector.shape_cast %24 : vector<1xf32> to vector<1x1xf32>
    %26 = arith.addf %21, %25 : vector<1x1xf32>
    %c0_17 = arith.constant 0 : index
    %c0_18 = arith.constant 0 : index
    %c0_19 = arith.constant 0 : index
    %27 = vector.load %arg6[%c0_17, %c0_18, %c0_19] : memref<1x1x1xf32, #tpu.memory_space<vmem>>, vector<1x1x1xf32>
    %28 = vector.shape_cast %27 : vector<1x1x1xf32> to vector<1x1xf32>
    %29 = vector.shape_cast %26 : vector<1x1xf32> to vector<1x1x1xf32>
    tpu.vector_store %arg6[%c0_17, %c0_18, %c0_19], %29 {strides = array<i32>} : memref<1x1x1xf32, #tpu.memory_space<vmem>>, vector<1x1x1xf32>,
    return
  }
  func.func @transform_0(%arg0: i32, %arg1: i32) -> (i32, i32) {
    %c1_i32 = arith.constant 1 : i32
    %0 = arith.muli %arg0, %c1_i32 : i32
    %1 = arith.addi %0, %arg1 : i32
    %c0_i32 = arith.constant 0 : i32
    %c0_i32_0 = arith.constant 0 : i32
    return %1, %c0_i32 : i32, i32
  }
  func.func @transform_1(%arg0: i32, %arg1: i32) -> (i32, i32) {
    %c1_i32 = arith.constant 1 : i32
    %0 = arith.muli %arg0, %c1_i32 : i32
    %1 = arith.addi %0, %arg1 : i32
    %c0_i32 = arith.constant 0 : i32
    %c0_i32_0 = arith.constant 0 : i32
    return %1, %c0_i32 : i32, i32
  }
  func.func @transform_2(%arg0: i32, %arg1: i32) -> (i32, i32) {
    %c1_i32 = arith.constant 1 : i32
    %0 = arith.muli %arg0, %c1_i32 : i32
    %1 = arith.addi %0, %arg1 : i32
    %c0_i32 = arith.constant 0 : i32
    %c0_i32_0 = arith.constant 0 : i32
    return %1, %c0_i32 : i32, i32
  }
  func.func @transform_3(%arg0: i32, %arg1: i32) -> (i32, i32, i32) {
    %c0_i32 = arith.constant 0 : i32
    %c0_i32_0 = arith.constant 0 : i32
    %c0_i32_1 = arith.constant 0 : i32
    return %arg0, %c0_i32, %c0_i32_0 : i32, i32, i32
  }
  func.func @transform_4(%arg0: i32, %arg1: i32) -> (i32, i32, i32) {
    %c0_i32 = arith.constant 0 : i32
    %c0_i32_0 = arith.constant 0 : i32
    %c0_i32_1 = arith.constant 0 : i32
    return %arg0, %c0_i32, %c0_i32_0 : i32, i32, i32
  }
}

module attributes {stable_mosaic.version = 11 : i64} {
  func.func @_wrmse_partial_kernel(%arg0: i32, %arg1: i32, %arg2: memref<8x128xf32, #tpu.memory_space<vmem>>, %arg3: memref<8x128xf32, #tpu.memory_space<vmem>>, %arg4: memref<8x128xf32, #tpu.memory_space<vmem>>, %arg5: memref<1x1x128xf32, #tpu.memory_space<vmem>>, %arg6: memref<1x1x1xf32, #tpu.memory_space<vmem>>) attributes {dimension_semantics = [#tpu.dimension_semantics<parallel>, #tpu.dimension_semantics<arbitrary>], iteration_bounds = array<i64: 2, 1>, scalar_prefetch = 0 : i64, scratch_operands = 0 : i64, tpu.core_type = #tpu.core_type<tc>, window_params = [{transform_indices = @transform_0, window_bounds = array<i64: 8, 128>}, {transform_indices = @transform_1, window_bounds = array<i64: 8, 128>}, {transform_indices = @transform_2, window_bounds = array<i64: 8, 128>}, {transform_indices = @transform_3, window_bounds = array<i64: 1, 1, 128>}, {transform_indices = @transform_4, window_bounds = array<i64: 1, 1, 1>}]} {
    %c0_i32 = arith.constant 0 : i32
    %0 = arith.cmpi eq, %arg1, %c0_i32 : i32
    %1 = arith.extui %0 : i1 to i32
    %c0_i32_0 = arith.constant 0 : i32
    %2 = arith.cmpi ne, %1, %c0_i32_0 : i32
    scf.if %2 {
      %cst_20 = arith.constant 0.000000e+00 : f32
      %27 = vector.broadcast %cst_20 : f32 to vector<1x128xf32>
      %c0_21 = arith.constant 0 : index
      %c0_22 = arith.constant 0 : index
      %c0_23 = arith.constant 0 : index
      %28 = vector.load %arg5[%c0_21, %c0_22, %c0_23] : memref<1x1x128xf32, #tpu.memory_space<vmem>>, vector<1x1x128xf32>
      %29 = vector.shape_cast %28 : vector<1x1x128xf32> to vector<1x128xf32>
      %30 = vector.shape_cast %27 : vector<1x128xf32> to vector<1x1x128xf32>
      tpu.vector_store %arg5[%c0_21, %c0_22, %c0_23], %30 {strides = array<i32>} : memref<1x1x128xf32, #tpu.memory_space<vmem>>, vector<1x1x128xf32>,
      %cst_24 = arith.constant 0.000000e+00 : f32
      %31 = vector.broadcast %cst_24 : f32 to vector<1x1xf32>
      %c0_25 = arith.constant 0 : index
      %c0_26 = arith.constant 0 : index
      %c0_27 = arith.constant 0 : index
      %32 = vector.load %arg6[%c0_25, %c0_26, %c0_27] : memref<1x1x1xf32, #tpu.memory_space<vmem>>, vector<1x1x1xf32>
      %33 = vector.shape_cast %32 : vector<1x1x1xf32> to vector<1x1xf32>
      %34 = vector.shape_cast %31 : vector<1x1xf32> to vector<1x1x1xf32>
      tpu.vector_store %arg6[%c0_25, %c0_26, %c0_27], %34 {strides = array<i32>} : memref<1x1x1xf32, #tpu.memory_space<vmem>>, vector<1x1x1xf32>,
    } else {
    }
    %c0 = arith.constant 0 : index
    %c0_1 = arith.constant 0 : index
    %3 = vector.load %arg2[%c0, %c0_1] : memref<8x128xf32, #tpu.memory_space<vmem>>, vector<8x128xf32>
    %c0_2 = arith.constant 0 : index
    %c0_3 = arith.constant 0 : index
    %4 = vector.load %arg3[%c0_2, %c0_3] : memref<8x128xf32, #tpu.memory_space<vmem>>, vector<8x128xf32>
    %5 = arith.subf %3, %4 : vector<8x128xf32>
    %c0_4 = arith.constant 0 : index
    %c0_5 = arith.constant 0 : index
    %6 = vector.load %arg4[%c0_4, %c0_5] : memref<8x128xf32, #tpu.memory_space<vmem>>, vector<8x128xf32>
    %7 = arith.mulf %6, %5 : vector<8x128xf32>
    %8 = arith.mulf %7, %5 : vector<8x128xf32>
    %c0_6 = arith.constant 0 : index
    %c0_7 = arith.constant 0 : index
    %c0_8 = arith.constant 0 : index
    %9 = vector.load %arg5[%c0_6, %c0_7, %c0_8] : memref<1x1x128xf32, #tpu.memory_space<vmem>>, vector<1x1x128xf32>
    %10 = vector.shape_cast %9 : vector<1x1x128xf32> to vector<1x128xf32>
    %cst = arith.constant dense<0.000000e+00> : vector<128xf32>
    %11 = vector.multi_reduction <add>, %8, %cst [0] : vector<8x128xf32> to vector<128xf32>
    %12 = vector.shape_cast %11 : vector<128xf32> to vector<1x128xf32>
    %13 = arith.addf %10, %12 : vector<1x128xf32>
    %c0_9 = arith.constant 0 : index
    %c0_10 = arith.constant 0 : index
    %c0_11 = arith.constant 0 : index
    %14 = vector.load %arg5[%c0_9, %c0_10, %c0_11] : memref<1x1x128xf32, #tpu.memory_space<vmem>>, vector<1x1x128xf32>
    %15 = vector.shape_cast %14 : vector<1x1x128xf32> to vector<1x128xf32>
    %16 = vector.shape_cast %13 : vector<1x128xf32> to vector<1x1x128xf32>
    tpu.vector_store %arg5[%c0_9, %c0_10, %c0_11], %16 {strides = array<i32>} : memref<1x1x128xf32, #tpu.memory_space<vmem>>, vector<1x1x128xf32>,
    %c0_12 = arith.constant 0 : index
    %c0_13 = arith.constant 0 : index
    %c0_14 = arith.constant 0 : index
    %17 = vector.load %arg6[%c0_12, %c0_13, %c0_14] : memref<1x1x1xf32, #tpu.memory_space<vmem>>, vector<1x1x1xf32>
    %18 = vector.shape_cast %17 : vector<1x1x1xf32> to vector<1x1xf32>
    %cst_15 = arith.constant dense<0.000000e+00> : vector<8xf32>
    %19 = vector.multi_reduction <add>, %6, %cst_15 [1] : vector<8x128xf32> to vector<8xf32>
    %20 = vector.shape_cast %19 : vector<8xf32> to vector<8x1xf32>
    %cst_16 = arith.constant dense<0.000000e+00> : vector<1xf32>
    %21 = vector.multi_reduction <add>, %20, %cst_16 [0] : vector<8x1xf32> to vector<1xf32>
    %22 = vector.shape_cast %21 : vector<1xf32> to vector<1x1xf32>
    %23 = arith.addf %18, %22 : vector<1x1xf32>
    %c0_17 = arith.constant 0 : index
    %c0_18 = arith.constant 0 : index
    %c0_19 = arith.constant 0 : index
    %24 = vector.load %arg6[%c0_17, %c0_18, %c0_19] : memref<1x1x1xf32, #tpu.memory_space<vmem>>, vector<1x1x1xf32>
    %25 = vector.shape_cast %24 : vector<1x1x1xf32> to vector<1x1xf32>
    %26 = vector.shape_cast %23 : vector<1x1xf32> to vector<1x1x1xf32>
    tpu.vector_store %arg6[%c0_17, %c0_18, %c0_19], %26 {strides = array<i32>} : memref<1x1x1xf32, #tpu.memory_space<vmem>>, vector<1x1x1xf32>,
    return
  }
  func.func @transform_0(%arg0: i32, %arg1: i32) -> (i32, i32) {
    %c1_i32 = arith.constant 1 : i32
    %0 = arith.muli %arg0, %c1_i32 : i32
    %1 = arith.addi %0, %arg1 : i32
    %c0_i32 = arith.constant 0 : i32
    %c0_i32_0 = arith.constant 0 : i32
    return %1, %c0_i32 : i32, i32
  }
  func.func @transform_1(%arg0: i32, %arg1: i32) -> (i32, i32) {
    %c1_i32 = arith.constant 1 : i32
    %0 = arith.muli %arg0, %c1_i32 : i32
    %1 = arith.addi %0, %arg1 : i32
    %c0_i32 = arith.constant 0 : i32
    %c0_i32_0 = arith.constant 0 : i32
    return %1, %c0_i32 : i32, i32
  }
  func.func @transform_2(%arg0: i32, %arg1: i32) -> (i32, i32) {
    %c1_i32 = arith.constant 1 : i32
    %0 = arith.muli %arg0, %c1_i32 : i32
    %1 = arith.addi %0, %arg1 : i32
    %c0_i32 = arith.constant 0 : i32
    %c0_i32_0 = arith.constant 0 : i32
    return %1, %c0_i32 : i32, i32
  }
  func.func @transform_3(%arg0: i32, %arg1: i32) -> (i32, i32, i32) {
    %c0_i32 = arith.constant 0 : i32
    %c0_i32_0 = arith.constant 0 : i32
    %c0_i32_1 = arith.constant 0 : i32
    return %arg0, %c0_i32, %c0_i32_0 : i32, i32, i32
  }
  func.func @transform_4(%arg0: i32, %arg1: i32) -> (i32, i32, i32) {
    %c0_i32 = arith.constant 0 : i32
    %c0_i32_0 = arith.constant 0 : i32
    %c0_i32_1 = arith.constant 0 : i32
    return %arg0, %c0_i32, %c0_i32_0 : i32, i32, i32
  }
}

</mosaic_0001>

<llo_original>
// kernel: tpu_custom_call.1
$region0: #{tpu_custom_call.1}
  #allocation0 [shape = 'u32[]', space=smem, size = 0x4, offset = 0x4, fixed_abs, tag = 'smem constant byte address 0x4 - core index']
  #allocation1 [shape = 'u32[144,128]{1,0:T(1,128)}', space=vmem, size = 0x12000, scoped, tag = 'internal scratch']
  %s0 = inlined_call_operand.hbm [shape: f32[16,128], index: 0, kind: input, shape index: {}]
  %s1 = inlined_call_operand.hbm [shape: f32[16,128], index: 1, kind: input, shape index: {}]
  %s2 = inlined_call_operand.hbm [shape: f32[16,16], index: 2, kind: input, shape index: {}]
  %s3 = inlined_call_operand.hbm [shape: f32[2,1,128], index: 3, kind: output, shape index: {0}]
  %s4 = inlined_call_operand.vmem [shape: f32[2,1,1], index: 4, kind: output, shape index: {1}]
  %5 = xla_tuple %s3, %s4
  %s6 = sld [smem:[#allocation0]]
  $region69: #{tpu_custom_call.1} parent=0
    _
  %s8 = ssub.s32 1, %s6
  %s9 = scalar_select 0, %s8, %s6
  $region1: #{tpu_custom_call.1} parent=0
    #allocation2 [shape = 'u8[8192]{0}', space=vmem, size = 0x2000, scoped, tag = 'input window, operand 0']
    #allocation3 [shape = 's32[2]{0}', space=sflag, size = 0x8, scoped, tag = 'scoped memory for tpu_custom_call.1']
    #allocation4 [shape = 's32[2]{0}', space=sflag, size = 0x8, scoped, tag = 'scoped memory for tpu_custom_call.1']
    #allocation5 [shape = 'u8[8192]{0}', space=vmem, size = 0x2000, scoped, tag = 'input window, operand 1']
    #allocation6 [shape = 's32[2]{0}', space=sflag, size = 0x8, scoped, tag = 'scoped memory for tpu_custom_call.1']
    #allocation7 [shape = 'u8[8192]{0}', space=vmem, size = 0x2000, scoped, tag = 'input window, operand 2']
    #allocation8 [shape = 'u8[1024]{0}', space=vmem, size = 0x400, scoped, tag = 'output window, operand 0']
    %10 = vsyncpa [#allocation3], 0
    %s11 = scalar_lea.sflag [#allocation3], 1
    %12 = vsyncpa %s11, 0
    %13 = vsyncpa [#allocation6], 0
    %s14 = scalar_lea.sflag [#allocation6], 1
    %15 = vsyncpa %s14, 0
    %16 = vsyncpa [#allocation4], 0
    %s17 = scalar_lea.sflag [#allocation4], 1
    %18 = vsyncpa %s17, 0
    loop: start=0, step=1, limit=4
    $region2: #{tpu_custom_call.1} parent=1 // loop_pre_header
      _
    $region3: #{tpu_custom_call.1} parent=1 // loop_header
      %s20 = sphi 0, %s24
      %p21 = scmp.ge.s32.totalorder %s20, 4
      %s27 = sphi 0, %s39
      %s28 = sphi 0, %s35
      %s29 = sphi 0, %s27
      %s30 = sphi 0, %s28
      %s31 = sphi 0, %s29
      %s32 = sphi 0, %s30
      %s44 = sphi 0, %s46
      %s47 = sphi 0, %s44
      %s48 = sphi 0, %s47
      %s64 = sphi 0, %s48
      %s72 = sphi 0, %s74
      %s75 = sphi 0, %s72
      %s76 = sphi 0, %s75
      %s92 = sphi 0, %s76
      %s100 = sphi 0, %s102
      %s103 = sphi 0, %s100
      %s104 = sphi 0, %s103
      %s120 = sphi 0, %s104
      %s126 = sphi 0, %s128
      %s129 = sphi 0, %s126
      %s130 = sphi 0, %s129
      %s146 = sphi 0, %s130
      %s152 = sphi 0, %s154
      %s155 = sphi 0, %s152
      %s156 = sphi 0, %s155
      %s172 = sphi 0, %s156
    $region4: #{tpu_custom_call.1} parent=1 // loop_header_branch
      %23 = sbr.rel (%p21) target = $region8
    $region5: #{tpu_custom_call.1} parent=1 // loop_body
      %s25 = ssub.s32 %s20, 1
      %s26 = ssub.s32 %s20, 2
      %s33 = sadd.s32 1, %s28
      %p34 = scmp.ge.s32.totalorder %s33, 1
      %s35 = scalar_select %p34, 0, %s33
      %s36 = sadd.s32 1, %s27
      %s37 = scalar_select %p34, %s36, %s27
      %p38 = scmp.ge.s32.totalorder %s37, 2
      %s39 = scalar_select %p38, 0, %s37
      %s40 = sadd.s32 %s27, %s28
      %s41 = sadd.s32 %s39, %s35
      %s42 = ssub.s32 %s40, %s41
      %p43 = scmp.eq.s32.totalorder %s42, 0
      %s45 = sadd.s32 %s44, 1
      %s46 = scalar_select %p43, %s44, %s45
      %p49 = pneg %p43
      %p50 = scmp.eq.s32.totalorder %s20, 1
      %p51 = por %p49, %p50
      %p52 = scmp.ne.s32.totalorder %s44, %s47
      %p53 = scmp.eq.s32.totalorder %s20, 0
      %p54 = por %p52, %p53
      %p55 = scmp.ne.s32.totalorder %s44, %s47
      %p56 = scmp.eq.s32.totalorder %s25, 1
      %p57 = por %p55, %p56
      %p58 = scmp.ne.s32.totalorder %s47, %s48
      %p59 = scmp.eq.s32.totalorder %s25, 0
      %p60 = por %p58, %p59
      %p61 = scmp.ne.s32.totalorder %s47, %s48
      %p62 = scmp.eq.s32.totalorder %s26, 1
      %p63 = por %p61, %p62
      %p65 = scmp.ne.s32.totalorder %s48, %s64
      %p66 = scmp.eq.s32.totalorder %s26, 0
      %p67 = por %p65, %p66
      %s68 = sadd.s32 %s27, %s28
      %s69 = sadd.s32 %s39, %s35
      %s70 = ssub.s32 %s68, %s69
      %p71 = scmp.eq.s32.totalorder %s70, 0
      %s73 = sadd.s32 %s72, 1
      %s74 = scalar_select %p71, %s72, %s73
      %p77 = pneg %p71
      %p78 = scmp.eq.s32.totalorder %s20, 1
      %p79 = por %p77, %p78
      %p80 = scmp.ne.s32.totalorder %s72, %s75
      %p81 = scmp.eq.s32.totalorder %s20, 0
      %p82 = por %p80, %p81
      %p83 = scmp.ne.s32.totalorder %s72, %s75
      %p84 = scmp.eq.s32.totalorder %s25, 1
      %p85 = por %p83, %p84
      %p86 = scmp.ne.s32.totalorder %s75, %s76
      %p87 = scmp.eq.s32.totalorder %s25, 0
      %p88 = por %p86, %p87
      %p89 = scmp.ne.s32.totalorder %s75, %s76
      %p90 = scmp.eq.s32.totalorder %s26, 1
      %p91 = por %p89, %p90
      %p93 = scmp.ne.s32.totalorder %s76, %s92
      %p94 = scmp.eq.s32.totalorder %s26, 0
      %p95 = por %p93, %p94
      %s96 = sadd.s32 %s27, %s28
      %s97 = sadd.s32 %s39, %s35
      %s98 = ssub.s32 %s96, %s97
      %p99 = scmp.eq.s32.totalorder %s98, 0
      %s101 = sadd.s32 %s100, 1
      %s102 = scalar_select %p99, %s100, %s101
      %p105 = pneg %p99
      %p106 = scmp.eq.s32.totalorder %s20, 1
      %p107 = por %p105, %p106
      %p108 = scmp.ne.s32.totalorder %s100, %s103
      %p109 = scmp.eq.s32.totalorder %s20, 0
      %p110 = por %p108, %p109
      %p111 = scmp.ne.s32.totalorder %s100, %s103
      %p112 = scmp.eq.s32.totalorder %s25, 1
      %p113 = por %p111, %p112
      %p114 = scmp.ne.s32.totalorder %s103, %s104
      %p115 = scmp.eq.s32.totalorder %s25, 0
      %p116 = por %p114, %p115
      %p117 = scmp.ne.s32.totalorder %s103, %s104
      %p118 = scmp.eq.s32.totalorder %s26, 1
      %p119 = por %p117, %p118
      %p121 = scmp.ne.s32.totalorder %s104, %s120
      %p122 = scmp.eq.s32.totalorder %s26, 0
      %p123 = por %p121, %p122
      %s124 = ssub.s32 %s27, %s39
      %p125 = scmp.eq.s32.totalorder %s124, 0
      %s127 = sadd.s32 %s126, 1
      %s128 = scalar_select %p125, %s126, %s127
      %p131 = pneg %p125
      %p132 = scmp.eq.s32.totalorder %s20, 1
      %p133 = por %p131, %p132
      %p134 = scmp.ne.s32.totalorder %s126, %s129
      %p135 = scmp.eq.s32.totalorder %s20, 0
      %p136 = por %p134, %p135
      %p137 = scmp.ne.s32.totalorder %s126, %s129
      %p138 = scmp.eq.s32.totalorder %s25, 1
      %p139 = por %p137, %p138
      %p140 = scmp.ne.s32.totalorder %s129, %s130
      %p141 = scmp.eq.s32.totalorder %s25, 0
      %p142 = por %p140, %p141
      %p143 = scmp.ne.s32.totalorder %s129, %s130
      %p144 = scmp.eq.s32.totalorder %s26, 1
      %p145 = por %p143, %p144
      %p147 = scmp.ne.s32.totalorder %s130, %s146
      %p148 = scmp.eq.s32.totalorder %s26, 0
      %p149 = por %p147, %p148
      %s150 = ssub.s32 %s27, %s39
      %p151 = scmp.eq.s32.totalorder %s150, 0
      %s153 = sadd.s32 %s152, 1
      %s154 = scalar_select %p151, %s152, %s153
      %p157 = pneg %p151
      %p158 = scmp.eq.s32.totalorder %s20, 1
      %p159 = por %p157, %p158
      %p160 = scmp.ne.s32.totalorder %s152, %s155
      %p161 = scmp.eq.s32.totalorder %s20, 0
      %p162 = por %p160, %p161
      %p163 = scmp.ne.s32.totalorder %s152, %s155
      %p164 = scmp.eq.s32.totalorder %s25, 1
      %p165 = por %p163, %p164
      %p166 = scmp.ne.s32.totalorder %s155, %s156
      %p167 = scmp.eq.s32.totalorder %s25, 0
      %p168 = por %p166, %p167
      %p169 = scmp.ne.s32.totalorder %s155, %s156
      %p170 = scmp.eq.s32.totalorder %s26, 1
      %p171 = por %p169, %p170
      %p173 = scmp.ne.s32.totalorder %s156, %s172
      %p174 = scmp.eq.s32.totalorder %s26, 0
      %p175 = por %p173, %p174
      %p176 = scmp.le.s32.totalorder 1, %s20
      %p177 = scmp.lt.s32.totalorder %s20, 3
      %p178 = pnand %p176, %p177
      %p179 = pneg %p178
      // Predicated region
      $region9: #{tpu_custom_call.1} parent=5 // pred_check
        _
      $region10: #{tpu_custom_call.1} parent=5 // pred_check_branch
        %181 = sbr.rel (%p178) target = $region12
      $region11: #{tpu_custom_call.1} parent=5 // pred_region
        %s182 = ssub.s32 %s20, 1
      $region12: #{tpu_custom_call.1} parent=5 // pred_fallthru
        _
      %p183 = scmp.lt.s32.totalorder %s20, 2
      // Predicated region
      $region13: #{tpu_custom_call.1} parent=5 // pred_check
        %p184 = pneg %p183
      $region14: #{tpu_custom_call.1} parent=5 // pred_check_branch
        %186 = sbr.rel (%p184) target = $region16
      $region15: #{tpu_custom_call.1} parent=5 // pred_region
        // Predicated region
        $region17: #{tpu_custom_call.1} parent=15 // pred_check
          %p187 = pneg %p54
        $region18: #{tpu_custom_call.1} parent=15 // pred_check_branch
          %189 = sbr.rel (%p187) target = $region20
        $region19: #{tpu_custom_call.1} parent=15 // pred_region
          %s190 = sand.u32 %s44, 1
          %s191 = scalar_lea.sflag [#allocation3], %s190
          %s192 = sand.u32 %s44, 1
          %s193 = smul.addr %s192, 8
          %s194 = scalar_lea.vmem [#allocation2], %s193
          %s195 = sadd.s32 %s27, %s28
          %s197 = ssub.s32 128, 128
          %198 = vsyncadd %s191, %s197
          %s199 = smul.addr %s195, 128
          %s200 = scalar_lea.hbm %s0, %s199
          %s202 = sshll.u32 %s194, 4
          %s203 = int_to_ptr.vmem [resolvable:$true] %s202
          %205 = dma.hbm_to_vmem [thread:$0]  %s200, 128, %s203, %s191
        $region20: #{tpu_custom_call.1} parent=15 // pred_fallthru
          _
        // Predicated region
        $region21: #{tpu_custom_call.1} parent=15 // pred_check
          %p206 = pneg %p82
        $region22: #{tpu_custom_call.1} parent=15 // pred_check_branch
          %208 = sbr.rel (%p206) target = $region24
        $region23: #{tpu_custom_call.1} parent=15 // pred_region
          %s209 = sand.u32 %s20, 1
          %s210 = scalar_lea.sflag [#allocation6], %s209
          %s211 = sand.u32 %s72, 1
          %s212 = smul.addr %s211, 8
          %s213 = scalar_lea.vmem [#allocation5], %s212
          %s214 = sadd.s32 %s27, %s28
          %s216 = ssub.s32 128, 128
          %217 = vsyncadd %s210, %s216
          %s218 = smul.addr %s214, 128
          %s219 = scalar_lea.hbm %s1, %s218
          %s221 = sshll.u32 %s213, 4
          %s222 = int_to_ptr.vmem [resolvable:$true] %s221
          %224 = dma.hbm_to_vmem [thread:$0]  %s219, 128, %s222, %s210
        $region24: #{tpu_custom_call.1} parent=15 // pred_fallthru
          _
        // Predicated region
        $region25: #{tpu_custom_call.1} parent=15 // pred_check
          %p225 = pneg %p110
        $region26: #{tpu_custom_call.1} parent=15 // pred_check_branch
          %227 = sbr.rel (%p225) target = $region28
        $region27: #{tpu_custom_call.1} parent=15 // pred_region
          %s228 = sand.u32 %s20, 1
          %s229 = scalar_lea.sflag [#allocation6], %s228
          %s230 = sand.u32 %s100, 1
          %s231 = smul.addr %s230, 8
          %s232 = scalar_lea.vmem [#allocation7], %s231
          %s233 = sadd.s32 %s27, %s28
          %s235 = ssub.s32 128, 128
          %236 = vsyncadd %s229, %s235
          %s237 = smul.addr %s233, 128
          %s238 = scalar_lea.hbm %s2, %s237
          %s240 = sshll.u32 %s232, 4
          %s241 = int_to_ptr.vmem [resolvable:$true] %s240
          %243 = dma.hbm_to_vmem [thread:$0]  %s238, 128, %s241, %s229
        $region28: #{tpu_custom_call.1} parent=15 // pred_fallthru
          _
      $region16: #{tpu_custom_call.1} parent=5 // pred_fallthru
        _
      %p244 = scmp.le.s32.totalorder 1, %s20
      %p245 = scmp.lt.s32.totalorder %s20, 3
      %p246 = pnand %p244, %p245
      %p247 = pneg %p246
      // Predicated region
      $region29: #{tpu_custom_call.1} parent=5 // pred_check
        _
      $region30: #{tpu_custom_call.1} parent=5 // pred_check_branch
        %249 = sbr.rel (%p246) target = $region32
      $region31: #{tpu_custom_call.1} parent=5 // pred_region
        %s250 = ssub.s32 %s20, 1
        %s251 = sand.u32 %s47, 1
        %s252 = scalar_lea.sflag [#allocation3], %s251
        %s253 = sand.u32 %s47, 1
        %s254 = smul.addr %s253, 8
        %s255 = scalar_lea.vmem [#allocation2], %s254
        // Predicated region
        $region33: #{tpu_custom_call.1} parent=31 // pred_check
          %p256 = pneg %p60
        $region34: #{tpu_custom_call.1} parent=31 // pred_check_branch
          %258 = sbr.rel (%p256) target = $region36
        $region35: #{tpu_custom_call.1} parent=31 // pred_region
          %259 = dma.done %s252, 128
        $region36: #{tpu_custom_call.1} parent=31 // pred_fallthru
          _
        %s260 = sand.u32 %s25, 1
        %s261 = scalar_lea.sflag [#allocation6], %s260
        %s262 = sand.u32 %s75, 1
        %s263 = smul.addr %s262, 8
        %s264 = scalar_lea.vmem [#allocation5], %s263
        // Predicated region
        $region37: #{tpu_custom_call.1} parent=31 // pred_check
          %p265 = pneg %p88
        $region38: #{tpu_custom_call.1} parent=31 // pred_check_branch
          %267 = sbr.rel (%p265) target = $region40
        $region39: #{tpu_custom_call.1} parent=31 // pred_region
          %268 = dma.done %s261, 128
        $region40: #{tpu_custom_call.1} parent=31 // pred_fallthru
          _
        %s269 = sand.u32 %s25, 1
        %s270 = scalar_lea.sflag [#allocation6], %s269
        %s271 = sand.u32 %s103, 1
        %s272 = smul.addr %s271, 8
        %s273 = scalar_lea.vmem [#allocation7], %s272
        // Predicated region
        $region41: #{tpu_custom_call.1} parent=31 // pred_check
          %p274 = pneg %p116
        $region42: #{tpu_custom_call.1} parent=31 // pred_check_branch
          %276 = sbr.rel (%p274) target = $region44
        $region43: #{tpu_custom_call.1} parent=31 // pred_region
          %277 = dma.done %s270, 128
        $region44: #{tpu_custom_call.1} parent=31 // pred_fallthru
          _
        %s278 = sand.u32 %s47, 1
        %s279 = scalar_lea.sflag [#allocation3], %s278
        %s280 = sand.u32 %s47, 1
        %s281 = smul.addr %s280, 8
        %s282 = scalar_lea.vmem [#allocation2], %s281
        %p283 = pneg %p60
        %p284 = pneg %p57
        %s285 = sand.u32 %s25, 1
        %s286 = scalar_lea.sflag [#allocation6], %s285
        %s287 = sand.u32 %s75, 1
        %s288 = smul.addr %s287, 8
        %s289 = scalar_lea.vmem [#allocation5], %s288
        %p290 = pneg %p88
        %p291 = pneg %p85
        %s292 = sand.u32 %s25, 1
        %s293 = scalar_lea.sflag [#allocation6], %s292
        %s294 = sand.u32 %s103, 1
        %s295 = smul.addr %s294, 8
        %s296 = scalar_lea.vmem [#allocation7], %s295
        %p297 = pneg %p116
        %p298 = pneg %p113
        %p299 = pneg %p142
        %p300 = pneg %p139
        %s301 = sand.u32 %s129, 1
        %s302 = scalar_lea.sflag [#allocation4], %s301
        %s303 = sand.u32 %s129, 1
        %s304 = scalar_lea.vmem [#allocation8], %s303
        %p305 = pneg %p168
        %p306 = pneg %p165
        %p307 = scmp.lt.s32.totalorder %s29, 1
        %s308 = scalar_select %p307, %s29, 1
        %s309 = scalar_lea.vmem %s4, %s308
        %s310 = sadd.s32 %s29, %s30
        %s311 = sadd.s32 %s29, %s30
        %s312 = sadd.s32 %s29, %s30
        %p313 = scmp.lt.s32.totalorder %s29, 1
        %s314 = scalar_select %p313, %s29, 1
        %s315 = scalar_lea.vmem %s4, %s314
        %p316 = scmp.eq.s32.totalorder %s30, 0
        // Predicated region
        $region45: #{tpu_custom_call.1} parent=31 // pred_check
          %p317 = pneg %p316
        $region46: #{tpu_custom_call.1} parent=31 // pred_check_branch
          %319 = sbr.rel (%p317) target = $region48
        $region47: #{tpu_custom_call.1} parent=31 // pred_region
          %320 = vst [vmem:[%s304] sm:$0x1] 0.0
          %vm321 = vcmask 0
          %322 = vst.msk [vmem:[%s315] sm:$0x1] %vm321, 0.0
        $region48: #{tpu_custom_call.1} parent=31 // pred_fallthru
          _
        %v323 = vld [vmem:[%s255] sm:$0xff]
        %v324 = vld [vmem:[%s264] sm:$0xff]
        %v325 = vsub.f32 %v323, %v324
        %v326 = vld [vmem:[%s273] sm:$0xff]
        %v327 = vlaneseq
        %v328 = vshrl.u32 %v327, 7
        %v329 = vsub.s32 0, %v328
        %v330 = vrot.slane %v326, %v329
        %332 = vbcast.lane.b32.xlu0 %v330, 256
        %v333 = vpop.permute.xlu0 %332
        %s335 = sor.u32 256, 8
        %336 = vbcast.lane.b32.xlu0 %v330, %s335
        %v337 = vpop.permute.xlu0 %336
        %v338 = vlaneseq
        %v339 = vshrl.u32 %v338, 7
        %v340 = vsub.s32 1, %v339
        %v341 = vrot.slane %v326, %v340
        %343 = vbcast.lane.b32.xlu0 %v341, 256
        %v344 = vpop.permute.xlu0 %343
        %s346 = sor.u32 256, 8
        %347 = vbcast.lane.b32.xlu0 %v341, %s346
        %v348 = vpop.permute.xlu0 %347
        %v349 = vlaneseq
        %v350 = vshrl.u32 %v349, 7
        %v351 = vsub.s32 2, %v350
        %v352 = vrot.slane %v326, %v351
        %354 = vbcast.lane.b32.xlu0 %v352, 256
        %v355 = vpop.permute.xlu0 %354
        %s357 = sor.u32 256, 8
        %358 = vbcast.lane.b32.xlu0 %v352, %s357
        %v359 = vpop.permute.xlu0 %358
        %v360 = vlaneseq
        %v361 = vshrl.u32 %v360, 7
        %v362 = vsub.s32 3, %v361
        %v363 = vrot.slane %v326, %v362
        %365 = vbcast.lane.b32.xlu0 %v363, 256
        %v366 = vpop.permute.xlu0 %365
        %s368 = sor.u32 256, 8
        %369 = vbcast.lane.b32.xlu0 %v363, %s368
        %v370 = vpop.permute.xlu0 %369
        %v371 = vlaneseq
        %v372 = vshrl.u32 %v371, 7
        %v373 = vsub.s32 4, %v372
        %v374 = vrot.slane %v326, %v373
        %376 = vbcast.lane.b32.xlu0 %v374, 256
        %v377 = vpop.permute.xlu0 %376
        %s379 = sor.u32 256, 8
        %380 = vbcast.lane.b32.xlu0 %v374, %s379
        %v381 = vpop.permute.xlu0 %380
        %v382 = vlaneseq
        %v383 = vshrl.u32 %v382, 7
        %v384 = vsub.s32 5, %v383
        %v385 = vrot.slane %v326, %v384
        %387 = vbcast.lane.b32.xlu0 %v385, 256
        %v388 = vpop.permute.xlu0 %387
        %s390 = sor.u32 256, 8
        %391 = vbcast.lane.b32.xlu0 %v385, %s390
        %v392 = vpop.permute.xlu0 %391
        %v393 = vlaneseq
        %v394 = vshrl.u32 %v393, 7
        %v395 = vsub.s32 6, %v394
        %v396 = vrot.slane %v326, %v395
        %398 = vbcast.lane.b32.xlu0 %v396, 256
        %v399 = vpop.permute.xlu0 %398
        %s401 = sor.u32 256, 8
        %402 = vbcast.lane.b32.xlu0 %v396, %s401
        %v403 = vpop.permute.xlu0 %402
        %v404 = vlaneseq
        %v405 = vshrl.u32 %v404, 7
        %v406 = vsub.s32 7, %v405
        %v407 = vrot.slane %v326, %v406
        %409 = vbcast.lane.b32.xlu0 %v407, 256
        %v410 = vpop.permute.xlu0 %409
        %s412 = sor.u32 256, 8
        %413 = vbcast.lane.b32.xlu0 %v407, %s412
        %v414 = vpop.permute.xlu0 %413
        %v415 = vcombine.low %v333, %v355
        %v416 = vcombine.high %v333, %v355
        %v418 = vunpack.c.l.s4 1983009808
        %v419 = vunpack.c.0.s8 %v418
        %v420 = vlaneseq
        %v421 = vshrl.u32 %v420, 7
        %v422 = vsub.s32 %v419, %v421
        %v423 = vrot.slane %v415, %v422
        %v425 = vunpack.c.l.s4 1983009808
        %v426 = vunpack.c.0.s8 %v425
        %v427 = vlaneseq
        %v428 = vshrl.u32 %v427, 7
        %v429 = vsub.s32 %v426, %v428
        %v430 = vrot.slane %v416, %v429
        %v431 = vcombine.low %v344, %v366
        %v432 = vcombine.high %v344, %v366
        %v434 = vunpack.c.l.s4 1983009808
        %v435 = vunpack.c.0.s8 %v434
        %v436 = vlaneseq
        %v437 = vshrl.u32 %v436, 7
        %v438 = vsub.s32 %v435, %v437
        %v439 = vrot.slane %v431, %v438
        %v441 = vunpack.c.l.s4 1983009808
        %v442 = vunpack.c.0.s8 %v441
        %v443 = vlaneseq
        %v444 = vshrl.u32 %v443, 7
        %v445 = vsub.s32 %v442, %v444
        %v446 = vrot.slane %v432, %v445
        %v447 = vcombine.low %v377, %v399
        %v448 = vcombine.high %v377, %v399
        %v450 = vunpack.c.l.s4 1983009808
        %v451 = vunpack.c.0.s8 %v450
        %v452 = vlaneseq
        %v453 = vshrl.u32 %v452, 7
        %v454 = vsub.s32 %v451, %v453
        %v455 = vrot.slane %v447, %v454
        %v457 = vunpack.c.l.s4 1983009808
        %v458 = vunpack.c.0.s8 %v457
        %v459 = vlaneseq
        %v460 = vshrl.u32 %v459, 7
        %v461 = vsub.s32 %v458, %v460
        %v462 = vrot.slane %v448, %v461
        %v463 = vcombine.low %v388, %v410
        %v464 = vcombine.high %v388, %v410
        %v466 = vunpack.c.l.s4 1983009808
        %v467 = vunpack.c.0.s8 %v466
        %v468 = vlaneseq
        %v469 = vshrl.u32 %v468, 7
        %v470 = vsub.s32 %v467, %v469
        %v471 = vrot.slane %v463, %v470
        %v473 = vunpack.c.l.s4 1983009808
        %v474 = vunpack.c.0.s8 %v473
        %v475 = vlaneseq
        %v476 = vshrl.u32 %v475, 7
        %v477 = vsub.s32 %v474, %v476
        %v478 = vrot.slane %v464, %v477
        %v479 = vcombine.low %v423, %v439
        %v480 = vcombine.high %v423, %v439
        %v482 = vunpack.c.l.s4 1934713408
        %v483 = vunpack.c.0.s8 %v482
        %v484 = vlaneseq
        %v485 = vshrl.u32 %v484, 7
        %v486 = vsub.s32 %v483, %v485
        %v487 = vrot.slane %v479, %v486
        %v489 = vunpack.c.l.s4 1934713408
        %v490 = vunpack.c.0.s8 %v489
        %v491 = vlaneseq
        %v492 = vshrl.u32 %v491, 7
        %v493 = vsub.s32 %v490, %v492
        %v494 = vrot.slane %v480, %v493
        %v495 = vcombine.low %v430, %v446
        %v496 = vcombine.high %v430, %v446
        %v498 = vunpack.c.l.s4 1934713408
        %v499 = vunpack.c.0.s8 %v498
        %v500 = vlaneseq
        %v501 = vshrl.u32 %v500, 7
        %v502 = vsub.s32 %v499, %v501
        %v503 = vrot.slane %v495, %v502
        %v505 = vunpack.c.l.s4 1934713408
        %v506 = vunpack.c.0.s8 %v505
        %v507 = vlaneseq
        %v508 = vshrl.u32 %v507, 7
        %v509 = vsub.s32 %v506, %v508
        %v510 = vrot.slane %v496, %v509
        %v511 = vcombine.low %v455, %v471
        %v512 = vcombine.high %v455, %v471
        %v514 = vunpack.c.l.s4 1934713408
        %v515 = vunpack.c.0.s8 %v514
        %v516 = vlaneseq
        %v517 = vshrl.u32 %v516, 7
        %v518 = vsub.s32 %v515, %v517
        %v519 = vrot.slane %v511, %v518
        %v521 = vunpack.c.l.s4 1934713408
        %v522 = vunpack.c.0.s8 %v521
        %v523 = vlaneseq
        %v524 = vshrl.u32 %v523, 7
        %v525 = vsub.s32 %v522, %v524
        %v526 = vrot.slane %v512, %v525
        %v527 = vcombine.low %v462, %v478
        %v528 = vcombine.high %v462, %v478
        %v530 = vunpack.c.l.s4 1934713408
        %v531 = vunpack.c.0.s8 %v530
        %v532 = vlaneseq
        %v533 = vshrl.u32 %v532, 7
        %v534 = vsub.s32 %v531, %v533
        %v535 = vrot.slane %v527, %v534
        %v537 = vunpack.c.l.s4 1934713408
        %v538 = vunpack.c.0.s8 %v537
        %v539 = vlaneseq
        %v540 = vshrl.u32 %v539, 7
        %v541 = vsub.s32 %v538, %v540
        %v542 = vrot.slane %v528, %v541
        %v543 = vcombine.low %v487, %v519
        %v544 = vcombine.high %v487, %v519
        %v545 = vcombine.low %v494, %v526
        %v546 = vcombine.high %v494, %v526
        %v547 = vcombine.low %v503, %v535
        %v548 = vcombine.high %v503, %v535
        %v549 = vcombine.low %v510, %v542
        %v550 = vcombine.high %v510, %v542
        %v551 = vcombine.low %v337, %v359
        %v552 = vcombine.high %v337, %v359
        %v554 = vunpack.c.l.s4 1983009808
        %v555 = vunpack.c.0.s8 %v554
        %v556 = vlaneseq
        %v557 = vshrl.u32 %v556, 7
        %v558 = vsub.s32 %v555, %v557
        %v559 = vrot.slane %v551, %v558
        %v561 = vunpack.c.l.s4 1983009808
        %v562 = vunpack.c.0.s8 %v561
        %v563 = vlaneseq
        %v564 = vshrl.u32 %v563, 7
        %v565 = vsub.s32 %v562, %v564
        %v566 = vrot.slane %v552, %v565
        %v567 = vcombine.low %v348, %v370
        %v568 = vcombine.high %v348, %v370
        %v570 = vunpack.c.l.s4 1983009808
        %v571 = vunpack.c.0.s8 %v570
        %v572 = vlaneseq
        %v573 = vshrl.u32 %v572, 7
        %v574 = vsub.s32 %v571, %v573
        %v575 = vrot.slane %v567, %v574
        %v577 = vunpack.c.l.s4 1983009808
        %v578 = vunpack.c.0.s8 %v577
        %v579 = vlaneseq
        %v580 = vshrl.u32 %v579, 7
        %v581 = vsub.s32 %v578, %v580
        %v582 = vrot.slane %v568, %v581
        %v583 = vcombine.low %v381, %v403
        %v584 = vcombine.high %v381, %v403
        %v586 = vunpack.c.l.s4 1983009808
        %v587 = vunpack.c.0.s8 %v586
        %v588 = vlaneseq
        %v589 = vshrl.u32 %v588, 7
        %v590 = vsub.s32 %v587, %v589
        %v591 = vrot.slane %v583, %v590
        %v593 = vunpack.c.l.s4 1983009808
        %v594 = vunpack.c.0.s8 %v593
        %v595 = vlaneseq
        %v596 = vshrl.u32 %v595, 7
        %v597 = vsub.s32 %v594, %v596
        %v598 = vrot.slane %v584, %v597
        %v599 = vcombine.low %v392, %v414
        %v600 = vcombine.high %v392, %v414
        %v602 = vunpack.c.l.s4 1983009808
        %v603 = vunpack.c.0.s8 %v602
        %v604 = vlaneseq
        %v605 = vshrl.u32 %v604, 7
        %v606 = vsub.s32 %v603, %v605
        %v607 = vrot.slane %v599, %v606
        %v609 = vunpack.c.l.s4 1983009808
        %v610 = vunpack.c.0.s8 %v609
        %v611 = vlaneseq
        %v612 = vshrl.u32 %v611, 7
        %v613 = vsub.s32 %v610, %v612
        %v614 = vrot.slane %v600, %v613
        %v615 = vcombine.low %v559, %v575
        %v616 = vcombine.high %v559, %v575
        %v618 = vunpack.c.l.s4 1934713408
        %v619 = vunpack.c.0.s8 %v618
        %v620 = vlaneseq
        %v621 = vshrl.u32 %v620, 7
        %v622 = vsub.s32 %v619, %v621
        %v623 = vrot.slane %v615, %v622
        %v625 = vunpack.c.l.s4 1934713408
        %v626 = vunpack.c.0.s8 %v625
        %v627 = vlaneseq
        %v628 = vshrl.u32 %v627, 7
        %v629 = vsub.s32 %v626, %v628
        %v630 = vrot.slane %v616, %v629
        %v631 = vcombine.low %v566, %v582
        %v632 = vcombine.high %v566, %v582
        %v634 = vunpack.c.l.s4 1934713408
        %v635 = vunpack.c.0.s8 %v634
        %v636 = vlaneseq
        %v637 = vshrl.u32 %v636, 7
        %v638 = vsub.s32 %v635, %v637
        %v639 = vrot.slane %v631, %v638
        %v641 = vunpack.c.l.s4 1934713408
        %v642 = vunpack.c.0.s8 %v641
        %v643 = vlaneseq
        %v644 = vshrl.u32 %v643, 7
        %v645 = vsub.s32 %v642, %v644
        %v646 = vrot.slane %v632, %v645
        %v647 = vcombine.low %v591, %v607
        %v648 = vcombine.high %v591, %v607
        %v650 = vunpack.c.l.s4 1934713408
        %v651 = vunpack.c.0.s8 %v650
        %v652 = vlaneseq
        %v653 = vshrl.u32 %v652, 7
        %v654 = vsub.s32 %v651, %v653
        %v655 = vrot.slane %v647, %v654
        %v657 = vunpack.c.l.s4 1934713408
        %v658 = vunpack.c.0.s8 %v657
        %v659 = vlaneseq
        %v660 = vshrl.u32 %v659, 7
        %v661 = vsub.s32 %v658, %v660
        %v662 = vrot.slane %v648, %v661
        %v663 = vcombine.low %v598, %v614
        %v664 = vcombine.high %v598, %v614
        %v666 = vunpack.c.l.s4 1934713408
        %v667 = vunpack.c.0.s8 %v666
        %v668 = vlaneseq
        %v669 = vshrl.u32 %v668, 7
        %v670 = vsub.s32 %v667, %v669
        %v671 = vrot.slane %v663, %v670
        %v673 = vunpack.c.l.s4 1934713408
        %v674 = vunpack.c.0.s8 %v673
        %v675 = vlaneseq
        %v676 = vshrl.u32 %v675, 7
        %v677 = vsub.s32 %v674, %v676
        %v678 = vrot.slane %v664, %v677
        %v679 = vcombine.low %v623, %v655
        %v680 = vcombine.high %v623, %v655
        %v681 = vcombine.low %v630, %v662
        %v682 = vcombine.high %v630, %v662
        %v683 = vcombine.low %v639, %v671
        %v684 = vcombine.high %v639, %v671
        %v685 = vcombine.low %v646, %v678
        %v686 = vcombine.high %v646, %v678
        %688 = vrot.lane.b32.xlu0 %v544, 8
        %v689 = vpop.permute.xlu0 %688
        %692 = vrot.lane.b32.xlu0 %v545, 16
        %v693 = vpop.permute.xlu0 %692
        %696 = vrot.lane.b32.xlu0 %v546, 24
        %v697 = vpop.permute.xlu0 %696
        %700 = vrot.lane.b32.xlu0 %v547, 32
        %v701 = vpop.permute.xlu0 %700
        %704 = vrot.lane.b32.xlu0 %v548, 40
        %v705 = vpop.permute.xlu0 %704
        %708 = vrot.lane.b32.xlu0 %v549, 48
        %v709 = vpop.permute.xlu0 %708
        %712 = vrot.lane.b32.xlu0 %v550, 56
        %v713 = vpop.permute.xlu0 %712
        %716 = vrot.lane.b32.xlu0 %v679, 64
        %v717 = vpop.permute.xlu0 %716
        %720 = vrot.lane.b32.xlu0 %v680, 72
        %v721 = vpop.permute.xlu0 %720
        %724 = vrot.lane.b32.xlu0 %v681, 80
        %v725 = vpop.permute.xlu0 %724
        %728 = vrot.lane.b32.xlu0 %v682, 88
        %v729 = vpop.permute.xlu0 %728
        %732 = vrot.lane.b32.xlu0 %v683, 96
        %v733 = vpop.permute.xlu0 %732
        %736 = vrot.lane.b32.xlu0 %v684, 104
        %v737 = vpop.permute.xlu0 %736
        %740 = vrot.lane.b32.xlu0 %v685, 112
        %v741 = vpop.permute.xlu0 %740
        %744 = vrot.lane.b32.xlu0 %v686, 120
        %v745 = vpop.permute.xlu0 %744
        %vm747 = vcmask 64512
        %v748 = vsel %vm747, %v543, %v689
        %vm749 = vcmask 130048
        %v750 = vsel %vm749, %v748, %v693
        %vm751 = vcmask 195584
        %v752 = vsel %vm751, %v750, %v697
        %vm753 = vcmask 261120
        %v754 = vsel %vm753, %v752, %v701
        %vm755 = vcmask 326656
        %v756 = vsel %vm755, %v754, %v705
        %vm757 = vcmask 392192
        %v758 = vsel %vm757, %v756, %v709
        %vm759 = vcmask 457728
        %v760 = vsel %vm759, %v758, %v713
        %vm761 = vcmask 523264
        %v762 = vsel %vm761, %v760, %v717
        %vm763 = vcmask 588800
        %v764 = vsel %vm763, %v762, %v721
        %vm765 = vcmask 654336
        %v766 = vsel %vm765, %v764, %v725
        %vm767 = vcmask 719872
        %v768 = vsel %vm767, %v766, %v729
        %vm769 = vcmask 785408
        %v770 = vsel %vm769, %v768, %v733
        %vm771 = vcmask 850944
        %v772 = vsel %vm771, %v770, %v737
        %vm773 = vcmask 916480
        %v774 = vsel %vm773, %v772, %v741
        %vm775 = vcmask 982016
        %v776 = vsel %vm775, %v774, %v745
        %v777 = vmul.f32 %v776, %v325
        %v778 = vmul.f32 %v777, %v325
        %v779 = vld [vmem:[%s304] sm:$0x1]
        %v780 = vrot.slane %v778, 4
        %v781 = vadd.f32 %v778, %v780
        %v782 = vrot.slane %v781, 2
        %v783 = vadd.f32 %v781, %v782
        %v784 = vrot.slane %v783, 1
        %v785 = vadd.f32 %v783, %v784
        %v786 = vadd.f32 %v779, %v785
        %787 = vst [vmem:[%s304] sm:$0x1] %v786
        %v788 = vld [vmem:[%s315] sm:$0x1]
        %v789 = vsel %vm749, %v326, 0.0
        %790 = vadd.xlane.f32.xlu0 %v789
        %v791 = vpop.xlane.xlu0 %790
        %v792 = vrot.slane %v791, 4
        %v793 = vadd.f32 %v791, %v792
        %v794 = vrot.slane %v793, 2
        %v795 = vadd.f32 %v793, %v794
        %v796 = vrot.slane %v795, 1
        %v797 = vadd.f32 %v795, %v796
        %v798 = vadd.f32 %v788, %v797
        %vm799 = vcmask 0
        %800 = vst.msk [vmem:[%s315] sm:$0x1] %vm799, %v798
        %s801 = sand.u32 %s129, 1
        %s802 = scalar_lea.sflag [#allocation4], %s801
        %s803 = sand.u32 %s129, 1
        %s804 = scalar_lea.vmem [#allocation8], %s803
        %p805 = scmp.lt.s32.totalorder %s29, 1
        %s806 = scalar_select %p805, %s29, 1
        %s807 = scalar_lea.vmem %s4, %s806
        // Predicated region
        $region49: #{tpu_custom_call.1} parent=31 // pred_check
          %p808 = pneg %p139
        $region50: #{tpu_custom_call.1} parent=31 // pred_check_branch
          %810 = sbr.rel (%p808) target = $region52
        $region51: #{tpu_custom_call.1} parent=31 // pred_region
          %s812 = ssub.s32 16, 16
          %813 = vsyncadd %s802, %s812
          %s814 = smul.addr %s29, 16
          %s815 = scalar_lea.hbm %s3, %s814
          %s817 = sshll.u32 %s804, 4
          %s818 = int_to_ptr.vmem [resolvable:$true] %s817
          %820 = dma.vmem_to_hbm [thread:$0]  %s818, 16, %s815, %s802
        $region52: #{tpu_custom_call.1} parent=31 // pred_fallthru
          _
        // Predicated region
        $region53: #{tpu_custom_call.1} parent=31 // pred_check
          %p821 = pneg %p165
        $region54: #{tpu_custom_call.1} parent=31 // pred_check_branch
          %823 = sbr.rel (%p821) target = $region56
        $region55: #{tpu_custom_call.1} parent=31 // pred_region
          _
        $region56: #{tpu_custom_call.1} parent=31 // pred_fallthru
          _
      $region32: #{tpu_custom_call.1} parent=5 // pred_fallthru
        _
      %p824 = scmp.le.s32.totalorder 2, %s20
      // Predicated region
      $region57: #{tpu_custom_call.1} parent=5 // pred_check
        %p825 = pneg %p824
      $region58: #{tpu_custom_call.1} parent=5 // pred_check_branch
        %827 = sbr.rel (%p825) target = $region60
      $region59: #{tpu_custom_call.1} parent=5 // pred_region
        %s828 = ssub.s32 %s20, 2
        // Predicated region
        $region61: #{tpu_custom_call.1} parent=59 // pred_check
          %p829 = pneg %p145
        $region62: #{tpu_custom_call.1} parent=59 // pred_check_branch
          %831 = sbr.rel (%p829) target = $region64
        $region63: #{tpu_custom_call.1} parent=59 // pred_region
          %s832 = sand.u32 %s130, 1
          %s833 = scalar_lea.sflag [#allocation4], %s832
          %s834 = sand.u32 %s130, 1
          %s835 = scalar_lea.vmem [#allocation8], %s834
          %836 = dma.done %s833, 16
        $region64: #{tpu_custom_call.1} parent=59 // pred_fallthru
          _
        // Predicated region
        $region65: #{tpu_custom_call.1} parent=59 // pred_check
          %p837 = pneg %p171
        $region66: #{tpu_custom_call.1} parent=59 // pred_check_branch
          %839 = sbr.rel (%p837) target = $region68
        $region67: #{tpu_custom_call.1} parent=59 // pred_region
          %p840 = scmp.lt.s32.totalorder %s31, 1
          %s841 = scalar_select %p840, %s31, 1
          %s842 = scalar_lea.vmem %s4, %s841
        $region68: #{tpu_custom_call.1} parent=59 // pred_fallthru
          _
      $region60: #{tpu_custom_call.1} parent=5 // pred_fallthru
        _
    $region6: #{tpu_custom_call.1} parent=1 // loop_footer
      %s24 = sadd.s32 1, %s20
    $region7: #{tpu_custom_call.1} parent=1 // loop_footer_branch
      %19 = sbr.rel target = $region3
    $region8: #{tpu_custom_call.1} parent=1 // loop_exit
      _
    %843 = vsyncpa [#allocation3], 1
    %s844 = scalar_lea.sflag [#allocation3], 1
    %845 = vsyncpa %s844, 1
    %846 = vsyncpa [#allocation6], 1
    %s847 = scalar_lea.sflag [#allocation6], 1
    %848 = vsyncpa %s847, 1
    %849 = vsyncpa [#allocation4], 1
    %s850 = scalar_lea.sflag [#allocation4], 1
    %851 = vsyncpa %s850, 1

// kernel: tpu_custom_call.1
$region0: #{tpu_custom_call.1}
  #allocation0 [shape = 'u32[]', space=smem, size = 0x4, offset = 0x4, fixed_abs, tag = 'smem constant byte address 0x4 - core index']
  #allocation1 [shape = 'u32[144,128]{1,0:T(1,128)}', space=vmem, size = 0x12000, scoped, tag = 'internal scratch']
  %s0 = inlined_call_operand.hbm [shape: f32[16,128], index: 0, kind: input, shape index: {}]
  %s1 = inlined_call_operand.hbm [shape: f32[16,128], index: 1, kind: input, shape index: {}]
  %s2 = inlined_call_operand.hbm [shape: f32[16,128], index: 2, kind: input, shape index: {}]
  %s3 = inlined_call_operand.hbm [shape: f32[2,1,128], index: 3, kind: output, shape index: {0}]
  %s4 = inlined_call_operand.vmem [shape: f32[2,1,1], index: 4, kind: output, shape index: {1}]
  %5 = xla_tuple %s3, %s4
  %s6 = sld [smem:[#allocation0]]
  $region69: #{tpu_custom_call.1} parent=0
    _
  %s8 = ssub.s32 1, %s6
  %s9 = scalar_select 0, %s8, %s6
  $region1: #{tpu_custom_call.1} parent=0
    #allocation2 [shape = 'u8[8192]{0}', space=vmem, size = 0x2000, scoped, tag = 'input window, operand 0']
    #allocation3 [shape = 's32[2]{0}', space=sflag, size = 0x8, scoped, tag = 'scoped memory for tpu_custom_call.1']
    #allocation4 [shape = 's32[2]{0}', space=sflag, size = 0x8, scoped, tag = 'scoped memory for tpu_custom_call.1']
    #allocation5 [shape = 'u8[8192]{0}', space=vmem, size = 0x2000, scoped, tag = 'input window, operand 1']
    #allocation6 [shape = 's32[2]{0}', space=sflag, size = 0x8, scoped, tag = 'scoped memory for tpu_custom_call.1']
    #allocation7 [shape = 'u8[8192]{0}', space=vmem, size = 0x2000, scoped, tag = 'input window, operand 2']
    #allocation8 [shape = 'u8[1024]{0}', space=vmem, size = 0x400, scoped, tag = 'output window, operand 0']
    %10 = vsyncpa [#allocation3], 0
    %s11 = scalar_lea.sflag [#allocation3], 1
    %12 = vsyncpa %s11, 0
    %13 = vsyncpa [#allocation6], 0
    %s14 = scalar_lea.sflag [#allocation6], 1
    %15 = vsyncpa %s14, 0
    %16 = vsyncpa [#allocation4], 0
    %s17 = scalar_lea.sflag [#allocation4], 1
    %18 = vsyncpa %s17, 0
    loop: start=0, step=1, limit=4
    $region2: #{tpu_custom_call.1} parent=1 // loop_pre_header
      _
    $region3: #{tpu_custom_call.1} parent=1 // loop_header
      %s20 = sphi 0, %s24
      %p21 = scmp.ge.s32.totalorder %s20, 4
      %s27 = sphi 0, %s39
      %s28 = sphi 0, %s35
      %s29 = sphi 0, %s27
      %s30 = sphi 0, %s28
      %s31 = sphi 0, %s29
      %s32 = sphi 0, %s30
      %s44 = sphi 0, %s46
      %s47 = sphi 0, %s44
      %s48 = sphi 0, %s47
      %s64 = sphi 0, %s48
      %s72 = sphi 0, %s74
      %s75 = sphi 0, %s72
      %s76 = sphi 0, %s75
      %s92 = sphi 0, %s76
      %s100 = sphi 0, %s102
      %s103 = sphi 0, %s100
      %s104 = sphi 0, %s103
      %s120 = sphi 0, %s104
      %s126 = sphi 0, %s128
      %s129 = sphi 0, %s126
      %s130 = sphi 0, %s129
      %s146 = sphi 0, %s130
      %s152 = sphi 0, %s154
      %s155 = sphi 0, %s152
      %s156 = sphi 0, %s155
      %s172 = sphi 0, %s156
    $region4: #{tpu_custom_call.1} parent=1 // loop_header_branch
      %23 = sbr.rel (%p21) target = $region8
    $region5: #{tpu_custom_call.1} parent=1 // loop_body
      %s25 = ssub.s32 %s20, 1
      %s26 = ssub.s32 %s20, 2
      %s33 = sadd.s32 1, %s28
      %p34 = scmp.ge.s32.totalorder %s33, 1
      %s35 = scalar_select %p34, 0, %s33
      %s36 = sadd.s32 1, %s27
      %s37 = scalar_select %p34, %s36, %s27
      %p38 = scmp.ge.s32.totalorder %s37, 2
      %s39 = scalar_select %p38, 0, %s37
      %s40 = sadd.s32 %s27, %s28
      %s41 = sadd.s32 %s39, %s35
      %s42 = ssub.s32 %s40, %s41
      %p43 = scmp.eq.s32.totalorder %s42, 0
      %s45 = sadd.s32 %s44, 1
      %s46 = scalar_select %p43, %s44, %s45
      %p49 = pneg %p43
      %p50 = scmp.eq.s32.totalorder %s20, 1
      %p51 = por %p49, %p50
      %p52 = scmp.ne.s32.totalorder %s44, %s47
      %p53 = scmp.eq.s32.totalorder %s20, 0
      %p54 = por %p52, %p53
      %p55 = scmp.ne.s32.totalorder %s44, %s47
      %p56 = scmp.eq.s32.totalorder %s25, 1
      %p57 = por %p55, %p56
      %p58 = scmp.ne.s32.totalorder %s47, %s48
      %p59 = scmp.eq.s32.totalorder %s25, 0
      %p60 = por %p58, %p59
      %p61 = scmp.ne.s32.totalorder %s47, %s48
      %p62 = scmp.eq.s32.totalorder %s26, 1
      %p63 = por %p61, %p62
      %p65 = scmp.ne.s32.totalorder %s48, %s64
      %p66 = scmp.eq.s32.totalorder %s26, 0
      %p67 = por %p65, %p66
      %s68 = sadd.s32 %s27, %s28
      %s69 = sadd.s32 %s39, %s35
      %s70 = ssub.s32 %s68, %s69
      %p71 = scmp.eq.s32.totalorder %s70, 0
      %s73 = sadd.s32 %s72, 1
      %s74 = scalar_select %p71, %s72, %s73
      %p77 = pneg %p71
      %p78 = scmp.eq.s32.totalorder %s20, 1
      %p79 = por %p77, %p78
      %p80 = scmp.ne.s32.totalorder %s72, %s75
      %p81 = scmp.eq.s32.totalorder %s20, 0
      %p82 = por %p80, %p81
      %p83 = scmp.ne.s32.totalorder %s72, %s75
      %p84 = scmp.eq.s32.totalorder %s25, 1
      %p85 = por %p83, %p84
      %p86 = scmp.ne.s32.totalorder %s75, %s76
      %p87 = scmp.eq.s32.totalorder %s25, 0
      %p88 = por %p86, %p87
      %p89 = scmp.ne.s32.totalorder %s75, %s76
      %p90 = scmp.eq.s32.totalorder %s26, 1
      %p91 = por %p89, %p90
      %p93 = scmp.ne.s32.totalorder %s76, %s92
      %p94 = scmp.eq.s32.totalorder %s26, 0
      %p95 = por %p93, %p94
      %s96 = sadd.s32 %s27, %s28
      %s97 = sadd.s32 %s39, %s35
      %s98 = ssub.s32 %s96, %s97
      %p99 = scmp.eq.s32.totalorder %s98, 0
      %s101 = sadd.s32 %s100, 1
      %s102 = scalar_select %p99, %s100, %s101
      %p105 = pneg %p99
      %p106 = scmp.eq.s32.totalorder %s20, 1
      %p107 = por %p105, %p106
      %p108 = scmp.ne.s32.totalorder %s100, %s103
      %p109 = scmp.eq.s32.totalorder %s20, 0
      %p110 = por %p108, %p109
      %p111 = scmp.ne.s32.totalorder %s100, %s103
      %p112 = scmp.eq.s32.totalorder %s25, 1
      %p113 = por %p111, %p112
      %p114 = scmp.ne.s32.totalorder %s103, %s104
      %p115 = scmp.eq.s32.totalorder %s25, 0
      %p116 = por %p114, %p115
      %p117 = scmp.ne.s32.totalorder %s103, %s104
      %p118 = scmp.eq.s32.totalorder %s26, 1
      %p119 = por %p117, %p118
      %p121 = scmp.ne.s32.totalorder %s104, %s120
      %p122 = scmp.eq.s32.totalorder %s26, 0
      %p123 = por %p121, %p122
      %s124 = ssub.s32 %s27, %s39
      %p125 = scmp.eq.s32.totalorder %s124, 0
      %s127 = sadd.s32 %s126, 1
      %s128 = scalar_select %p125, %s126, %s127
      %p131 = pneg %p125
      %p132 = scmp.eq.s32.totalorder %s20, 1
      %p133 = por %p131, %p132
      %p134 = scmp.ne.s32.totalorder %s126, %s129
      %p135 = scmp.eq.s32.totalorder %s20, 0
      %p136 = por %p134, %p135
      %p137 = scmp.ne.s32.totalorder %s126, %s129
      %p138 = scmp.eq.s32.totalorder %s25, 1
      %p139 = por %p137, %p138
      %p140 = scmp.ne.s32.totalorder %s129, %s130
      %p141 = scmp.eq.s32.totalorder %s25, 0
      %p142 = por %p140, %p141
      %p143 = scmp.ne.s32.totalorder %s129, %s130
      %p144 = scmp.eq.s32.totalorder %s26, 1
      %p145 = por %p143, %p144
      %p147 = scmp.ne.s32.totalorder %s130, %s146
      %p148 = scmp.eq.s32.totalorder %s26, 0
      %p149 = por %p147, %p148
      %s150 = ssub.s32 %s27, %s39
      %p151 = scmp.eq.s32.totalorder %s150, 0
      %s153 = sadd.s32 %s152, 1
      %s154 = scalar_select %p151, %s152, %s153
      %p157 = pneg %p151
      %p158 = scmp.eq.s32.totalorder %s20, 1
      %p159 = por %p157, %p158
      %p160 = scmp.ne.s32.totalorder %s152, %s155
      %p161 = scmp.eq.s32.totalorder %s20, 0
      %p162 = por %p160, %p161
      %p163 = scmp.ne.s32.totalorder %s152, %s155
      %p164 = scmp.eq.s32.totalorder %s25, 1
      %p165 = por %p163, %p164
      %p166 = scmp.ne.s32.totalorder %s155, %s156
      %p167 = scmp.eq.s32.totalorder %s25, 0
      %p168 = por %p166, %p167
      %p169 = scmp.ne.s32.totalorder %s155, %s156
      %p170 = scmp.eq.s32.totalorder %s26, 1
      %p171 = por %p169, %p170
      %p173 = scmp.ne.s32.totalorder %s156, %s172
      %p174 = scmp.eq.s32.totalorder %s26, 0
      %p175 = por %p173, %p174
      %p176 = scmp.le.s32.totalorder 1, %s20
      %p177 = scmp.lt.s32.totalorder %s20, 3
      %p178 = pnand %p176, %p177
      %p179 = pneg %p178
      // Predicated region
      $region9: #{tpu_custom_call.1} parent=5 // pred_check
        _
      $region10: #{tpu_custom_call.1} parent=5 // pred_check_branch
        %181 = sbr.rel (%p178) target = $region12
      $region11: #{tpu_custom_call.1} parent=5 // pred_region
        %s182 = ssub.s32 %s20, 1
      $region12: #{tpu_custom_call.1} parent=5 // pred_fallthru
        _
      %p183 = scmp.lt.s32.totalorder %s20, 2
      // Predicated region
      $region13: #{tpu_custom_call.1} parent=5 // pred_check
        %p184 = pneg %p183
      $region14: #{tpu_custom_call.1} parent=5 // pred_check_branch
        %186 = sbr.rel (%p184) target = $region16
      $region15: #{tpu_custom_call.1} parent=5 // pred_region
        // Predicated region
        $region17: #{tpu_custom_call.1} parent=15 // pred_check
          %p187 = pneg %p54
        $region18: #{tpu_custom_call.1} parent=15 // pred_check_branch
          %189 = sbr.rel (%p187) target = $region20
        $region19: #{tpu_custom_call.1} parent=15 // pred_region
          %s190 = sand.u32 %s44, 1
          %s191 = scalar_lea.sflag [#allocation3], %s190
          %s192 = sand.u32 %s44, 1
          %s193 = smul.addr %s192, 8
          %s194 = scalar_lea.vmem [#allocation2], %s193
          %s195 = sadd.s32 %s27, %s28
          %s197 = ssub.s32 128, 128
          %198 = vsyncadd %s191, %s197
          %s199 = smul.addr %s195, 128
          %s200 = scalar_lea.hbm %s0, %s199
          %s202 = sshll.u32 %s194, 4
          %s203 = int_to_ptr.vmem [resolvable:$true] %s202
          %205 = dma.hbm_to_vmem [thread:$0]  %s200, 128, %s203, %s191
        $region20: #{tpu_custom_call.1} parent=15 // pred_fallthru
          _
        // Predicated region
        $region21: #{tpu_custom_call.1} parent=15 // pred_check
          %p206 = pneg %p82
        $region22: #{tpu_custom_call.1} parent=15 // pred_check_branch
          %208 = sbr.rel (%p206) target = $region24
        $region23: #{tpu_custom_call.1} parent=15 // pred_region
          %s209 = sand.u32 %s20, 1
          %s210 = scalar_lea.sflag [#allocation6], %s209
          %s211 = sand.u32 %s72, 1
          %s212 = smul.addr %s211, 8
          %s213 = scalar_lea.vmem [#allocation5], %s212
          %s214 = sadd.s32 %s27, %s28
          %s216 = ssub.s32 128, 128
          %217 = vsyncadd %s210, %s216
          %s218 = smul.addr %s214, 128
          %s219 = scalar_lea.hbm %s1, %s218
          %s221 = sshll.u32 %s213, 4
          %s222 = int_to_ptr.vmem [resolvable:$true] %s221
          %224 = dma.hbm_to_vmem [thread:$0]  %s219, 128, %s222, %s210
        $region24: #{tpu_custom_call.1} parent=15 // pred_fallthru
          _
        // Predicated region
        $region25: #{tpu_custom_call.1} parent=15 // pred_check
          %p225 = pneg %p110
        $region26: #{tpu_custom_call.1} parent=15 // pred_check_branch
          %227 = sbr.rel (%p225) target = $region28
        $region27: #{tpu_custom_call.1} parent=15 // pred_region
          %s228 = sand.u32 %s20, 1
          %s229 = scalar_lea.sflag [#allocation6], %s228
          %s230 = sand.u32 %s100, 1
          %s231 = smul.addr %s230, 8
          %s232 = scalar_lea.vmem [#allocation7], %s231
          %s233 = sadd.s32 %s27, %s28
          %s235 = ssub.s32 128, 128
          %236 = vsyncadd %s229, %s235
          %s237 = smul.addr %s233, 128
          %s238 = scalar_lea.hbm %s2, %s237
          %s240 = sshll.u32 %s232, 4
          %s241 = int_to_ptr.vmem [resolvable:$true] %s240
          %243 = dma.hbm_to_vmem [thread:$0]  %s238, 128, %s241, %s229
        $region28: #{tpu_custom_call.1} parent=15 // pred_fallthru
          _
      $region16: #{tpu_custom_call.1} parent=5 // pred_fallthru
        _
      %p244 = scmp.le.s32.totalorder 1, %s20
      %p245 = scmp.lt.s32.totalorder %s20, 3
      %p246 = pnand %p244, %p245
      %p247 = pneg %p246
      // Predicated region
      $region29: #{tpu_custom_call.1} parent=5 // pred_check
        _
      $region30: #{tpu_custom_call.1} parent=5 // pred_check_branch
        %249 = sbr.rel (%p246) target = $region32
      $region31: #{tpu_custom_call.1} parent=5 // pred_region
        %s250 = ssub.s32 %s20, 1
        %s251 = sand.u32 %s47, 1
        %s252 = scalar_lea.sflag [#allocation3], %s251
        %s253 = sand.u32 %s47, 1
        %s254 = smul.addr %s253, 8
        %s255 = scalar_lea.vmem [#allocation2], %s254
        // Predicated region
        $region33: #{tpu_custom_call.1} parent=31 // pred_check
          %p256 = pneg %p60
        $region34: #{tpu_custom_call.1} parent=31 // pred_check_branch
          %258 = sbr.rel (%p256) target = $region36
        $region35: #{tpu_custom_call.1} parent=31 // pred_region
          %259 = dma.done %s252, 128
        $region36: #{tpu_custom_call.1} parent=31 // pred_fallthru
          _
        %s260 = sand.u32 %s25, 1
        %s261 = scalar_lea.sflag [#allocation6], %s260
        %s262 = sand.u32 %s75, 1
        %s263 = smul.addr %s262, 8
        %s264 = scalar_lea.vmem [#allocation5], %s263
        // Predicated region
        $region37: #{tpu_custom_call.1} parent=31 // pred_check
          %p265 = pneg %p88
        $region38: #{tpu_custom_call.1} parent=31 // pred_check_branch
          %267 = sbr.rel (%p265) target = $region40
        $region39: #{tpu_custom_call.1} parent=31 // pred_region
          %268 = dma.done %s261, 128
        $region40: #{tpu_custom_call.1} parent=31 // pred_fallthru
          _
        %s269 = sand.u32 %s25, 1
        %s270 = scalar_lea.sflag [#allocation6], %s269
        %s271 = sand.u32 %s103, 1
        %s272 = smul.addr %s271, 8
        %s273 = scalar_lea.vmem [#allocation7], %s272
        // Predicated region
        $region41: #{tpu_custom_call.1} parent=31 // pred_check
          %p274 = pneg %p116
        $region42: #{tpu_custom_call.1} parent=31 // pred_check_branch
          %276 = sbr.rel (%p274) target = $region44
        $region43: #{tpu_custom_call.1} parent=31 // pred_region
          %277 = dma.done %s270, 128
        $region44: #{tpu_custom_call.1} parent=31 // pred_fallthru
          _
        %s278 = sand.u32 %s47, 1
        %s279 = scalar_lea.sflag [#allocation3], %s278
        %s280 = sand.u32 %s47, 1
        %s281 = smul.addr %s280, 8
        %s282 = scalar_lea.vmem [#allocation2], %s281
        %p283 = pneg %p60
        %p284 = pneg %p57
        %s285 = sand.u32 %s25, 1
        %s286 = scalar_lea.sflag [#allocation6], %s285
        %s287 = sand.u32 %s75, 1
        %s288 = smul.addr %s287, 8
        %s289 = scalar_lea.vmem [#allocation5], %s288
        %p290 = pneg %p88
        %p291 = pneg %p85
        %s292 = sand.u32 %s25, 1
        %s293 = scalar_lea.sflag [#allocation6], %s292
        %s294 = sand.u32 %s103, 1
        %s295 = smul.addr %s294, 8
        %s296 = scalar_lea.vmem [#allocation7], %s295
        %p297 = pneg %p116
        %p298 = pneg %p113
        %p299 = pneg %p142
        %p300 = pneg %p139
        %s301 = sand.u32 %s129, 1
        %s302 = scalar_lea.sflag [#allocation4], %s301
        %s303 = sand.u32 %s129, 1
        %s304 = scalar_lea.vmem [#allocation8], %s303
        %p305 = pneg %p168
        %p306 = pneg %p165
        %p307 = scmp.lt.s32.totalorder %s29, 1
        %s308 = scalar_select %p307, %s29, 1
        %s309 = scalar_lea.vmem %s4, %s308
        %s310 = sadd.s32 %s29, %s30
        %s311 = sadd.s32 %s29, %s30
        %s312 = sadd.s32 %s29, %s30
        %p313 = scmp.lt.s32.totalorder %s29, 1
        %s314 = scalar_select %p313, %s29, 1
        %s315 = scalar_lea.vmem %s4, %s314
        %p316 = scmp.eq.s32.totalorder %s30, 0
        // Predicated region
        $region45: #{tpu_custom_call.1} parent=31 // pred_check
          %p317 = pneg %p316
        $region46: #{tpu_custom_call.1} parent=31 // pred_check_branch
          %319 = sbr.rel (%p317) target = $region48
        $region47: #{tpu_custom_call.1} parent=31 // pred_region
          %320 = vst [vmem:[%s304] sm:$0x1] 0.0
          %vm321 = vcmask 0
          %322 = vst.msk [vmem:[%s315] sm:$0x1] %vm321, 0.0
        $region48: #{tpu_custom_call.1} parent=31 // pred_fallthru
          _
        %v323 = vld [vmem:[%s255] sm:$0xff]
        %v324 = vld [vmem:[%s264] sm:$0xff]
        %v325 = vsub.f32 %v323, %v324
        %v326 = vld [vmem:[%s273] sm:$0xff]
        %v327 = vmul.f32 %v326, %v325
        %v328 = vmul.f32 %v327, %v325
        %v329 = vld [vmem:[%s304] sm:$0x1]
        %v330 = vrot.slane %v328, 4
        %v331 = vadd.f32 %v328, %v330
        %v332 = vrot.slane %v331, 2
        %v333 = vadd.f32 %v331, %v332
        %v334 = vrot.slane %v333, 1
        %v335 = vadd.f32 %v333, %v334
        %v336 = vadd.f32 %v329, %v335
        %337 = vst [vmem:[%s304] sm:$0x1] %v336
        %v338 = vld [vmem:[%s315] sm:$0x1]
        %339 = vadd.xlane.f32.xlu0 %v326
        %v340 = vpop.xlane.xlu0 %339
        %v341 = vrot.slane %v340, 4
        %v342 = vadd.f32 %v340, %v341
        %v343 = vrot.slane %v342, 2
        %v344 = vadd.f32 %v342, %v343
        %v345 = vrot.slane %v344, 1
        %v346 = vadd.f32 %v344, %v345
        %v347 = vadd.f32 %v338, %v346
        %vm348 = vcmask 0
        %349 = vst.msk [vmem:[%s315] sm:$0x1] %vm348, %v347
        %s350 = sand.u32 %s129, 1
        %s351 = scalar_lea.sflag [#allocation4], %s350
        %s352 = sand.u32 %s129, 1
        %s353 = scalar_lea.vmem [#allocation8], %s352
        %p354 = scmp.lt.s32.totalorder %s29, 1
        %s355 = scalar_select %p354, %s29, 1
        %s356 = scalar_lea.vmem %s4, %s355
        // Predicated region
        $region49: #{tpu_custom_call.1} parent=31 // pred_check
          %p357 = pneg %p139
        $region50: #{tpu_custom_call.1} parent=31 // pred_check_branch
          %359 = sbr.rel (%p357) target = $region52
        $region51: #{tpu_custom_call.1} parent=31 // pred_region
          %s361 = ssub.s32 16, 16
          %362 = vsyncadd %s351, %s361
          %s363 = smul.addr %s29, 16
          %s364 = scalar_lea.hbm %s3, %s363
          %s366 = sshll.u32 %s353, 4
          %s367 = int_to_ptr.vmem [resolvable:$true] %s366
          %369 = dma.vmem_to_hbm [thread:$0]  %s367, 16, %s364, %s351
        $region52: #{tpu_custom_call.1} parent=31 // pred_fallthru
          _
        // Predicated region
        $region53: #{tpu_custom_call.1} parent=31 // pred_check
          %p370 = pneg %p165
        $region54: #{tpu_custom_call.1} parent=31 // pred_check_branch
          %372 = sbr.rel (%p370) target = $region56
        $region55: #{tpu_custom_call.1} parent=31 // pred_region
          _
        $region56: #{tpu_custom_call.1} parent=31 // pred_fallthru
          _
      $region32: #{tpu_custom_call.1} parent=5 // pred_fallthru
        _
      %p373 = scmp.le.s32.totalorder 2, %s20
      // Predicated region
      $region57: #{tpu_custom_call.1} parent=5 // pred_check
        %p374 = pneg %p373
      $region58: #{tpu_custom_call.1} parent=5 // pred_check_branch
        %376 = sbr.rel (%p374) target = $region60
      $region59: #{tpu_custom_call.1} parent=5 // pred_region
        %s377 = ssub.s32 %s20, 2
        // Predicated region
        $region61: #{tpu_custom_call.1} parent=59 // pred_check
          %p378 = pneg %p145
        $region62: #{tpu_custom_call.1} parent=59 // pred_check_branch
          %380 = sbr.rel (%p378) target = $region64
        $region63: #{tpu_custom_call.1} parent=59 // pred_region
          %s381 = sand.u32 %s130, 1
          %s382 = scalar_lea.sflag [#allocation4], %s381
          %s383 = sand.u32 %s130, 1
          %s384 = scalar_lea.vmem [#allocation8], %s383
          %385 = dma.done %s382, 16
        $region64: #{tpu_custom_call.1} parent=59 // pred_fallthru
          _
        // Predicated region
        $region65: #{tpu_custom_call.1} parent=59 // pred_check
          %p386 = pneg %p171
        $region66: #{tpu_custom_call.1} parent=59 // pred_check_branch
          %388 = sbr.rel (%p386) target = $region68
        $region67: #{tpu_custom_call.1} parent=59 // pred_region
          %p389 = scmp.lt.s32.totalorder %s31, 1
          %s390 = scalar_select %p389, %s31, 1
          %s391 = scalar_lea.vmem %s4, %s390
        $region68: #{tpu_custom_call.1} parent=59 // pred_fallthru
          _
      $region60: #{tpu_custom_call.1} parent=5 // pred_fallthru
        _
    $region6: #{tpu_custom_call.1} parent=1 // loop_footer
      %s24 = sadd.s32 1, %s20
    $region7: #{tpu_custom_call.1} parent=1 // loop_footer_branch
      %19 = sbr.rel target = $region3
    $region8: #{tpu_custom_call.1} parent=1 // loop_exit
      _
    %392 = vsyncpa [#allocation3], 1
    %s393 = scalar_lea.sflag [#allocation3], 1
    %394 = vsyncpa %s393, 1
    %395 = vsyncpa [#allocation6], 1
    %s396 = scalar_lea.sflag [#allocation6], 1
    %397 = vsyncpa %s396, 1
    %398 = vsyncpa [#allocation4], 1
    %s399 = scalar_lea.sflag [#allocation4], 1
    %400 = vsyncpa %s399, 1

</llo_original>
